<compile_context>
chip_gen: v7x
topology: tpu7x:2x2x1
jax: 0.10.0
libtpu: 0.0.40
codegen_flags: <defaults>
</compile_context>

<pallas_src>
import functools

import jax
import jax.numpy as jnp
from jax import lax
from jax.experimental import pallas as pl
from jax.experimental.pallas import tpu as pltpu

_LANES = 128


def _round_up(x, m):
    return (x + m - 1) // m * m


def _scoped_vmem_cap():
    """Usable scoped-VMEM budget for this generation (conservative fallback 32 MiB)."""
    default = 32 * 1024 * 1024
    try:
        info = pltpu.get_tpu_info()
    except Exception:
        return default
    cap = None
    for name in ("vmem_capacity_bytes", "vmem_size_bytes", "vmem_bytes"):
        cap = getattr(info, name, None)
        if cap:
            break
    if not cap:
        return default
    # ~half of physical: 64 MiB on 128-MiB v5e/v6e, 32 MiB on 64-MiB v7x.
    return int(min(cap // 2, 64 * 1024 * 1024))


def _vh_kernel_c1(x_ref, w_ref, b_ref, o_ref, *, apply_tanh):
    # x_ref: (TM, H) VMEM   w_ref: (1, H) VMEM   b_ref: (1,) SMEM f32   o_ref: (TM, 1)
    # C == 1 mat-vec: VPU chunk accumulation + a single XLU lane reduce.
    H = x_ref.shape[-1]
    nfull = H // _LANES
    rem = H - nfull * _LANES

    def chunk(lo, hi):
        return (x_ref[:, lo:hi].astype(jnp.float32) *
                w_ref[:, lo:hi].astype(jnp.float32))

    if nfull >= 1:
        # Accumulate full 128-lane chunks with VPU adds; one cross-lane reduce at
        # the end keeps the XLU off the critical path (matters on v7x HBM feed).
        acc = chunk(0, _LANES)
        for c in range(1, nfull):
            acc = acc + chunk(c * _LANES, (c + 1) * _LANES)
        y = jnp.sum(acc, axis=-1, keepdims=True)
        if rem:
            y = y + jnp.sum(chunk(nfull * _LANES, H), axis=-1, keepdims=True)
    else:
        y = jnp.sum(chunk(0, H), axis=-1, keepdims=True)

    y = y + b_ref[0]
    if apply_tanh:
        y = jnp.tanh(y)
    o_ref[...] = y.astype(o_ref.dtype)


def _vh_kernel_general(x_ref, w_ref, b_ref, o_ref, *, apply_tanh):
    # x_ref: (TM, H) VMEM   w_ref: (C, H) VMEM (torch layout, resident)
    # b_ref: (1, C) VMEM f32   o_ref: (TM, C)
    x = x_ref[...].astype(jnp.float32)
    w = w_ref[...].astype(jnp.float32)
    # Contract over H directly on the (C, H) weight -> no wrapper-side weight.T.
    y = lax.dot_general(x, w, dimension_numbers=(((1,), (1,)), ((), ())),
                        preferred_element_type=jnp.float32)
    y = y + b_ref[...].astype(jnp.float32)
    if apply_tanh:
        y = jnp.tanh(y)
    o_ref[...] = y.astype(o_ref.dtype)


def value_head_forward(hidden_states, weight, bias, *, apply_tanh=True,
                       tm=None, use_pallas=None, cast_x_to_bf16=False):
    """hidden_states: [B, S, H]; weight: [C, H] (torch Linear layout); bias: [C]."""
    B, S, H = hidden_states.shape
    C, H_w = weight.shape
    assert H_w == H, "weight must be [num_labels, hidden_size]"
    M = B * S
    out_dtype = hidden_states.dtype

    x2d = hidden_states.reshape(M, H)
    if cast_x_to_bf16 and x2d.dtype == jnp.float32:
        # Halves the HBM read bytes of the (memory-bound) kernel; only a net win
        # when the cast fuses upstream / activations arrive in bf16 already.
        x2d = x2d.astype(jnp.bfloat16)

    def _xla_path():
        y = x2d.astype(jnp.float32) @ weight.T.astype(jnp.float32) + bias
        if apply_tanh:
            y = jnp.tanh(y)
        return y.astype(out_dtype).reshape(B, S, C)

    # Tiny problems: grid/launch overhead dominates -> let XLA fuse tanh(x@W^T+b).
    if use_pallas is None:
        use_pallas = (M * H) >= (1 << 16)
    if not use_pallas:
        return _xla_path()

    itemsize = jnp.dtype(x2d.dtype).itemsize
    out_itemsize = jnp.dtype(out_dtype).itemsize
    sublane = {4: 8, 2: 16, 1: 32}.get(itemsize, 8)

    Hl = _round_up(H, _LANES)          # lane-padded sizes for VMEM accounting
    Cl = _round_up(C, _LANES)
    scoped_cap = _scoped_vmem_cap()

    if tm is None:
        # Biggest row tile whose double-buffered x pair fits ~half the scoped VMEM.
        x_budget = scoped_cap // 2
        tm = x_budget // (2 * Hl * itemsize)
        tm_cap = 2048 if scoped_cap >= (48 << 20) else 1024   # v5e/v6e vs v7x
        tm = max(sublane, min(tm_cap, (tm // sublane) * sublane))
        # Keep >= 4 row tiles so v7x's two TensorCores both get work; near-free on
        # single-TC v5e/v6e (~0.35 us extra per grid step).
        tm = min(tm, max(sublane, _round_up(pl.cdiv(M, 4), sublane)))
    tm = max(sublane, (tm // sublane) * sublane)
    tm = min(tm, _round_up(M, sublane))

    # VMEM estimate with lane padding (out block (TM, C<128) occupies (TM, 128)).
    def _est(tm_):
        return (2 * tm_ * Hl * itemsize                     # double-buffered x tiles
                + 2 * tm_ * Cl * out_itemsize               # double-buffered out tiles
                + 2 * max(8, _round_up(C, 8)) * Hl * 4      # resident weight
                + 2 * 8 * Cl * 4)                           # resident bias

    while _est(tm) > scoped_cap and tm > sublane:
        tm = max(sublane, ((tm // 2) // sublane) * sublane)
    est = _est(tm)
    if est > scoped_cap:
        # Resident weight alone exceeds scoped VMEM (num_classes == hidden_size with
        # huge H).  TODO(synk): add a C/H-tiled variant; fall back to XLA for now.
        return _xla_path()

    vmem_limit = int(min(scoped_cap, est + max(est // 2, 1 << 20)))

    grid = (pl.cdiv(M, tm),)           # ragged last tile handled by Pallas masking

    cost = pl.CostEstimate(
        flops=2 * M * H * C,
        transcendentals=(M * C) if apply_tanh else 0,
        bytes_accessed=M * H * itemsize + C * H * 4 + C * 4 + M * C * out_itemsize,
    )
    cparams = pltpu.CompilerParams(
        dimension_semantics=("parallel",),   # row tiles are independent
        vmem_limit_bytes=vmem_limit,
    )

    x_spec = pl.BlockSpec((tm, H), lambda i: (i, 0))
    out_spec = pl.BlockSpec((tm, C), lambda i: (i, 0))

    if C == 1:
        kernel = functools.partial(_vh_kernel_c1, apply_tanh=apply_tanh)
        w_row = weight.reshape(1, H)                       # resident weight row
        b_smem = bias.reshape(1).astype(jnp.float32)       # SMEM scalar bias
        in_specs = [
            x_spec,
            pl.BlockSpec((1, H), lambda i: (0, 0)),
            pl.BlockSpec(memory_space=pltpu.SMEM),
        ]
        args = (x2d, w_row, b_smem)
    else:
        kernel = functools.partial(_vh_kernel_general, apply_tanh=apply_tanh)
        b2d = bias.reshape(1, C).astype(jnp.float32)
        in_specs = [
            x_spec,
            pl.BlockSpec((C, H), lambda i: (0, 0)),        # resident (C, H) weights
            pl.BlockSpec((1, C), lambda i: (0, 0)),        # resident bias
        ]
        args = (x2d, weight, b2d)

    out2d = pl.pallas_call(
        kernel,
        out_shape=jax.ShapeDtypeStruct((M, C), out_dtype),
        grid=grid,
        in_specs=in_specs,
        out_specs=out_spec,
        compiler_params=cparams,
        cost_estimate=cost,
    )(*args)

    return out2d.reshape(B, S, C)


if __name__ == "__main__":
    # Config implied by the module: hidden_size=32, num_labels=1,
    # summary_use_proj=True, summary_proj_to_labels=True, summary_activation='tanh'.
    B, S, H, C = 2, 8, 32, 1

    key = jax.random.PRNGKey(0)
    k_x, k_w, k_b = jax.random.split(key, 3)
    hidden_states = jax.random.normal(k_x, (B, S, H), dtype=jnp.float32)
    weight = jax.random.normal(k_w, (C, H), dtype=jnp.float32) * (1.0 / jnp.sqrt(H))
    bias = jax.random.normal(k_b, (C,), dtype=jnp.float32) * 0.01

    # 1) C == 1 VPU mat-vec path (force the Pallas kernel at this toy size).
    out = jax.block_until_ready(
        value_head_forward(hidden_states, weight, bias, use_pallas=True))
    ref = jnp.tanh(hidden_states @ weight.T + bias)
    assert out.shape == (B, S, C)
    assert jnp.allclose(out, ref, atol=1e-5, rtol=1e-5)

    # 2) Ragged M with NO wrapper pad: M=20, tm=8 -> grid=(3,), masked tail block.
    B2, S2 = 2, 10
    hs2 = jax.random.normal(k_x, (B2, S2, H), dtype=jnp.float32)
    out2 = jax.block_until_ready(
        value_head_forward(hs2, weight, bias, use_pallas=True, tm=8))
    ref2 = jnp.tanh(hs2 @ weight.T + bias)
    assert jnp.allclose(out2, ref2, atol=1e-5, rtol=1e-5)

    # 3) General C > 1 path (num_labels > 1) -> MXU dot_general kernel, (C, H) weights.
    C3 = 4
    w3 = jax.random.normal(k_w, (C3, H), dtype=jnp.float32) * (1.0 / jnp.sqrt(H))
    b3 = jax.random.normal(k_b, (C3,), dtype=jnp.float32) * 0.01
    out3 = jax.block_until_ready(
        value_head_forward(hidden_states, w3, b3, use_pallas=True))
    ref3 = jnp.tanh(hidden_states @ w3.T + b3)
    assert jnp.allclose(out3, ref3, atol=1e-5, rtol=1e-5)

    # 4) Chunked lane-reduction with a remainder chunk (H = 160 = 128 + 32).
    H4 = 160
    hs4 = jax.random.normal(k_x, (B, S, H4), dtype=jnp.float32)
    w4 = jax.random.normal(k_w, (C, H4), dtype=jnp.float32) * (1.0 / jnp.sqrt(H4))
    out4 = jax.block_until_ready(
        value_head_forward(hs4, w4, bias, use_pallas=True))
    ref4 = jnp.tanh(hs4 @ w4.T + bias)
    assert jnp.allclose(out4, ref4, atol=1e-5, rtol=1e-5)

    # 5) Native bf16 activations (half the HBM read bytes); f32 accumulation/tanh.
    H5 = 256
    hs5 = jax.random.normal(k_x, (B, S, H5), dtype=jnp.float32).astype(jnp.bfloat16)
    w5 = jax.random.normal(k_w, (C, H5), dtype=jnp.float32) * (1.0 / jnp.sqrt(H5))
    out5 = jax.block_until_ready(
        value_head_forward(hs5, w5, bias, use_pallas=True))
    ref5 = jnp.tanh(hs5.astype(jnp.float32) @ w5.T + bias)
    assert out5.dtype == jnp.bfloat16
    assert jnp.allclose(out5.astype(jnp.float32), ref5, atol=2e-2, rtol=2e-2)

    print("KERNEL_OK")
</pallas_src>

<mosaic_0001>
module attributes {stable_mosaic.version = 11 : i64} {
  func.func @_vh_kernel_c1(%arg0: i32, %arg1: memref<8x32xf32, #tpu.memory_space<vmem>>, %arg2: memref<1x32xf32, #tpu.memory_space<vmem>>, %arg3: memref<1xf32, #tpu.memory_space<smem>>, %arg4: memref<8x1xf32, #tpu.memory_space<vmem>>) attributes {dimension_semantics = [#tpu.dimension_semantics<parallel>], iteration_bounds = array<i64: 2>, scalar_prefetch = 0 : i64, scratch_operands = 0 : i64, tpu.core_type = #tpu.core_type<tc>, window_params = [{transform_indices = @transform_0, window_bounds = array<i64: 8, 32>}, {pipeline_mode = #tpu.pipeline_mode<synchronous>, transform_indices = @transform_1, window_bounds = array<i64: 1, 32>}, {transform_indices = @transform_2, window_bounds = array<i64: 1>}, {transform_indices = @transform_3, window_bounds = array<i64: 8, 1>}]} {
    %c0 = arith.constant 0 : index
    %c0_0 = arith.constant 0 : index
    %0 = vector.load %arg1[%c0, %c0_0] : memref<8x32xf32, #tpu.memory_space<vmem>>, vector<8x32xf32>
    %c0_1 = arith.constant 0 : index
    %c0_2 = arith.constant 0 : index
    %1 = vector.load %arg2[%c0_1, %c0_2] : memref<1x32xf32, #tpu.memory_space<vmem>>, vector<1x32xf32>
    %2 = vector.broadcast %1 : vector<1x32xf32> to vector<8x32xf32>
    %3 = arith.mulf %0, %2 : vector<8x32xf32>
    %cst = arith.constant dense<0.000000e+00> : vector<8xf32>
    %4 = vector.multi_reduction <add>, %3, %cst [1] : vector<8x32xf32> to vector<8xf32>
    %5 = vector.shape_cast %4 : vector<8xf32> to vector<8x1xf32>
    %c0_3 = arith.constant 0 : index
    %6 = memref.load %arg3[%c0_3] : memref<1xf32, #tpu.memory_space<smem>>
    %7 = vector.broadcast %6 : f32 to vector<8x1xf32>
    %8 = arith.addf %5, %7 : vector<8x1xf32>
    %9 = math.tanh %8 : vector<8x1xf32>
    %c0_4 = arith.constant 0 : index
    %c0_5 = arith.constant 0 : index
    %10 = vector.load %arg4[%c0_4, %c0_5] : memref<8x1xf32, #tpu.memory_space<vmem>>, vector<8x1xf32>
    tpu.vector_store %arg4[%c0_4, %c0_5], %9 {strides = array<i32>} : memref<8x1xf32, #tpu.memory_space<vmem>>, vector<8x1xf32>,
    return
  }
  func.func @transform_0(%arg0: i32) -> (i32, i32) {
    %c0_i32 = arith.constant 0 : i32
    %c0_i32_0 = arith.constant 0 : i32
    return %arg0, %c0_i32 : i32, i32
  }
  func.func @transform_1(%arg0: i32) -> (i32, i32) {
    %c0_i32 = arith.constant 0 : i32
    %c0_i32_0 = arith.constant 0 : i32
    %c0_i32_1 = arith.constant 0 : i32
    return %c0_i32, %c0_i32_0 : i32, i32
  }
  func.func @transform_2(%arg0: i32) -> i32 {
    %c0_i32 = arith.constant 0 : i32
    %c0_i32_0 = arith.constant 0 : i32
    return %c0_i32 : i32
  }
  func.func @transform_3(%arg0: i32) -> (i32, i32) {
    %c0_i32 = arith.constant 0 : i32
    %c0_i32_0 = arith.constant 0 : i32
    return %arg0, %c0_i32 : i32, i32
  }
}

</mosaic_0001>

<llo_original>
// kernel: tpu_custom_call.1
$region0: #{tpu_custom_call.1}
  #allocation0 [shape = 'u32[]', space=smem, size = 0x4, offset = 0x4, fixed_abs, tag = 'smem constant byte address 0x4 - core index']
  #allocation1 [shape = 'u32[144,128]{1,0:T(1,128)}', space=vmem, size = 0x12000, scoped, tag = 'internal scratch']
  #allocation2 [shape = 'f32[1]{0:T(128)S(6)}', space=smem, size = 0x200, scoped, tag = 'scoped memory for tpu_custom_call.1']
  %s0 = inlined_call_operand.hbm [shape: f32[16,32], index: 0, kind: input, shape index: {}]
  %s1 = inlined_call_operand.vmem [shape: f32[1,32], index: 1, kind: input, shape index: {}]
  %s2 = inlined_call_operand.<no memory space> [shape: f32[1], index: 2, kind: input, shape index: {}]
  %s3 = inlined_call_operand.vmem [shape: f32[16,1], index: 3, kind: output, shape index: {}]
  %s4 = sld [smem:[#allocation0]]
  $region49: #{tpu_custom_call.1} parent=0
    _
  %s6 = ssub.s32 1, %s4
  %s7 = scalar_select 0, %s6, %s4
  %8 = sst [smem:[#allocation2]] %s2
  $region1: #{tpu_custom_call.1} parent=0
    #allocation3 [shape = 'u8[8192]{0}', space=vmem, size = 0x2000, scoped, tag = 'input window, operand 0']
    #allocation4 [shape = 's32[2]{0}', space=sflag, size = 0x8, scoped, tag = 'scoped memory for tpu_custom_call.1']
    %9 = vsyncpa [#allocation4], 0
    %s10 = scalar_lea.sflag [#allocation4], 1
    %11 = vsyncpa %s10, 0
    loop: start=0, step=1, limit=4
    $region2: #{tpu_custom_call.1} parent=1 // loop_pre_header
      _
    $region3: #{tpu_custom_call.1} parent=1 // loop_header
      %s13 = sphi 0, %s17
      %p14 = scmp.ge.s32.totalorder %s13, 4
      %s23 = sphi 0, %s25
      %s26 = sphi 0, %s23
      %s27 = sphi 0, %s26
      %s43 = sphi 0, %s27
      %s47 = sphi 0, %s47
      %s49 = sphi 0, %s47
      %s50 = sphi 0, %s49
      %s64 = sphi 0, %s50
      %s68 = sphi 0, %s68
      %s70 = sphi 0, %s68
      %s71 = sphi 0, %s70
      %s85 = sphi 0, %s71
      %s91 = sphi 0, %s93
      %s94 = sphi 0, %s91
      %s95 = sphi 0, %s94
      %s111 = sphi 0, %s95
    $region4: #{tpu_custom_call.1} parent=1 // loop_header_branch
      %16 = sbr.rel (%p14) target = $region8
    $region5: #{tpu_custom_call.1} parent=1 // loop_body
      %s18 = ssub.s32 %s13, 1
      %s19 = ssub.s32 %s13, 2
      %s20 = sadd.s32 %s13, 1
      %s21 = ssub.s32 %s13, %s20
      %p22 = scmp.eq.s32.totalorder %s21, 0
      %s24 = sadd.s32 %s23, 1
      %s25 = scalar_select %p22, %s23, %s24
      %p28 = pneg %p22
      %p29 = scmp.eq.s32.totalorder %s13, 1
      %p30 = por %p28, %p29
      %p31 = scmp.ne.s32.totalorder %s23, %s26
      %p32 = scmp.eq.s32.totalorder %s13, 0
      %p33 = por %p31, %p32
      %p34 = scmp.ne.s32.totalorder %s23, %s26
      %p35 = scmp.eq.s32.totalorder %s18, 1
      %p36 = por %p34, %p35
      %p37 = scmp.ne.s32.totalorder %s26, %s27
      %p38 = scmp.eq.s32.totalorder %s18, 0
      %p39 = por %p37, %p38
      %p40 = scmp.ne.s32.totalorder %s26, %s27
      %p41 = scmp.eq.s32.totalorder %s19, 1
      %p42 = por %p40, %p41
      %p44 = scmp.ne.s32.totalorder %s27, %s43
      %p45 = scmp.eq.s32.totalorder %s19, 0
      %p46 = por %p44, %p45
      %s48 = sadd.s32 %s47, 1
      %p51 = scmp.eq.s32.totalorder %s13, 1
      %p52 = scmp.ne.s32.totalorder %s47, %s49
      %p53 = scmp.eq.s32.totalorder %s13, 0
      %p54 = por %p52, %p53
      %p55 = scmp.ne.s32.totalorder %s47, %s49
      %p56 = scmp.eq.s32.totalorder %s18, 1
      %p57 = por %p55, %p56
      %p58 = scmp.ne.s32.totalorder %s49, %s50
      %p59 = scmp.eq.s32.totalorder %s18, 0
      %p60 = por %p58, %p59
      %p61 = scmp.ne.s32.totalorder %s49, %s50
      %p62 = scmp.eq.s32.totalorder %s19, 1
      %p63 = por %p61, %p62
      %p65 = scmp.ne.s32.totalorder %s50, %s64
      %p66 = scmp.eq.s32.totalorder %s19, 0
      %p67 = por %p65, %p66
      %s69 = sadd.s32 %s68, 1
      %p72 = scmp.eq.s32.totalorder %s13, 1
      %p73 = scmp.ne.s32.totalorder %s68, %s70
      %p74 = scmp.eq.s32.totalorder %s13, 0
      %p75 = por %p73, %p74
      %p76 = scmp.ne.s32.totalorder %s68, %s70
      %p77 = scmp.eq.s32.totalorder %s18, 1
      %p78 = por %p76, %p77
      %p79 = scmp.ne.s32.totalorder %s70, %s71
      %p80 = scmp.eq.s32.totalorder %s18, 0
      %p81 = por %p79, %p80
      %p82 = scmp.ne.s32.totalorder %s70, %s71
      %p83 = scmp.eq.s32.totalorder %s19, 1
      %p84 = por %p82, %p83
      %p86 = scmp.ne.s32.totalorder %s71, %s85
      %p87 = scmp.eq.s32.totalorder %s19, 0
      %p88 = por %p86, %p87
      %s89 = ssub.s32 %s13, %s20
      %p90 = scmp.eq.s32.totalorder %s89, 0
      %s92 = sadd.s32 %s91, 1
      %s93 = scalar_select %p90, %s91, %s92
      %p96 = pneg %p90
      %p97 = scmp.eq.s32.totalorder %s13, 1
      %p98 = por %p96, %p97
      %p99 = scmp.ne.s32.totalorder %s91, %s94
      %p100 = scmp.eq.s32.totalorder %s13, 0
      %p101 = por %p99, %p100
      %p102 = scmp.ne.s32.totalorder %s91, %s94
      %p103 = scmp.eq.s32.totalorder %s18, 1
      %p104 = por %p102, %p103
      %p105 = scmp.ne.s32.totalorder %s94, %s95
      %p106 = scmp.eq.s32.totalorder %s18, 0
      %p107 = por %p105, %p106
      %p108 = scmp.ne.s32.totalorder %s94, %s95
      %p109 = scmp.eq.s32.totalorder %s19, 1
      %p110 = por %p108, %p109
      %p112 = scmp.ne.s32.totalorder %s95, %s111
      %p113 = scmp.eq.s32.totalorder %s19, 0
      %p114 = por %p112, %p113
      %p115 = scmp.le.s32.totalorder 1, %s13
      %p116 = scmp.lt.s32.totalorder %s13, 3
      %p117 = pnand %p115, %p116
      %p118 = pneg %p117
      // Predicated region
      $region9: #{tpu_custom_call.1} parent=5 // pred_check
        _
      $region10: #{tpu_custom_call.1} parent=5 // pred_check_branch
        %120 = sbr.rel (%p117) target = $region12
      $region11: #{tpu_custom_call.1} parent=5 // pred_region
        %s121 = ssub.s32 %s13, 1
        // Predicated region
        $region13: #{tpu_custom_call.1} parent=11 // pred_check
          %p122 = pneg %p60
        $region14: #{tpu_custom_call.1} parent=11 // pred_check_branch
          %124 = sbr.rel (%p122) target = $region16
        $region15: #{tpu_custom_call.1} parent=11 // pred_region
          _
        $region16: #{tpu_custom_call.1} parent=11 // pred_fallthru
          _
        // Predicated region
        $region17: #{tpu_custom_call.1} parent=11 // pred_check
          %p125 = pneg %p81
        $region18: #{tpu_custom_call.1} parent=11 // pred_check_branch
          %127 = sbr.rel (%p125) target = $region20
        $region19: #{tpu_custom_call.1} parent=11 // pred_region
          _
        $region20: #{tpu_custom_call.1} parent=11 // pred_fallthru
          _
      $region12: #{tpu_custom_call.1} parent=5 // pred_fallthru
        _
      %p128 = scmp.lt.s32.totalorder %s13, 2
      // Predicated region
      $region21: #{tpu_custom_call.1} parent=5 // pred_check
        %p129 = pneg %p128
      $region22: #{tpu_custom_call.1} parent=5 // pred_check_branch
        %131 = sbr.rel (%p129) target = $region24
      $region23: #{tpu_custom_call.1} parent=5 // pred_region
        // Predicated region
        $region25: #{tpu_custom_call.1} parent=23 // pred_check
          %p132 = pneg %p33
        $region26: #{tpu_custom_call.1} parent=23 // pred_check_branch
          %134 = sbr.rel (%p132) target = $region28
        $region27: #{tpu_custom_call.1} parent=23 // pred_region
          %s135 = sand.u32 %s23, 1
          %s136 = scalar_lea.sflag [#allocation4], %s135
          %s137 = sand.u32 %s23, 1
          %s138 = smul.addr %s137, 8
          %s139 = scalar_lea.vmem [#allocation3], %s138
          %s141 = ssub.s32 128, 128
          %142 = vsyncadd %s136, %s141
          %s143 = smul.addr %s13, 128
          %s144 = scalar_lea.hbm %s0, %s143
          %s146 = sshll.u32 %s139, 4
          %s147 = int_to_ptr.vmem [resolvable:$true] %s146
          %149 = dma.hbm_to_vmem [thread:$0]  %s144, 128, %s147, %s136
        $region28: #{tpu_custom_call.1} parent=23 // pred_fallthru
          _
      $region24: #{tpu_custom_call.1} parent=5 // pred_fallthru
        _
      %p150 = scmp.le.s32.totalorder 1, %s13
      %p151 = scmp.lt.s32.totalorder %s13, 3
      %p152 = pnand %p150, %p151
      %p153 = pneg %p152
      // Predicated region
      $region29: #{tpu_custom_call.1} parent=5 // pred_check
        _
      $region30: #{tpu_custom_call.1} parent=5 // pred_check_branch
        %155 = sbr.rel (%p152) target = $region32
      $region31: #{tpu_custom_call.1} parent=5 // pred_region
        %s156 = ssub.s32 %s13, 1
        %s157 = sand.u32 %s26, 1
        %s158 = scalar_lea.sflag [#allocation4], %s157
        %s159 = sand.u32 %s26, 1
        %s160 = smul.addr %s159, 8
        %s161 = scalar_lea.vmem [#allocation3], %s160
        // Predicated region
        $region33: #{tpu_custom_call.1} parent=31 // pred_check
          %p162 = pneg %p39
        $region34: #{tpu_custom_call.1} parent=31 // pred_check_branch
          %164 = sbr.rel (%p162) target = $region36
        $region35: #{tpu_custom_call.1} parent=31 // pred_region
          %165 = dma.done %s158, 128
        $region36: #{tpu_custom_call.1} parent=31 // pred_fallthru
          _
        %s166 = sand.u32 %s26, 1
        %s167 = scalar_lea.sflag [#allocation4], %s166
        %s168 = sand.u32 %s26, 1
        %s169 = smul.addr %s168, 8
        %s170 = scalar_lea.vmem [#allocation3], %s169
        %p171 = pneg %p39
        %p172 = pneg %p36
        %p173 = pneg %p60
        %p174 = pneg %p57
        %p175 = pneg %p81
        %p176 = pneg %p78
        %p177 = pneg %p107
        %p178 = pneg %p104
        %p179 = scmp.lt.s32.totalorder %s18, 1
        %s180 = scalar_select %p179, %s18, 1
        %s181 = smul.addr %s180, 8
        %s182 = scalar_lea.vmem %s3, %s181
        %p183 = scmp.lt.s32.totalorder %s18, 1
        %s184 = scalar_select %p183, %s18, 1
        %s185 = smul.addr %s184, 8
        %s186 = scalar_lea.vmem %s3, %s185
        %v187 = vld [vmem:[%s161] sm:$0xff]
        %v188 = vld [vmem:[%s1] sm:$0x1]
        %v190 = vlaneseq
        %v191 = vshrl.u32 %v190, 7
        %v192 = vsub.s32 0, %v191
        %v193 = vrot.slane %v188, %v192
        %v195 = vmul.f32 %v187, %v193
        %vm196 = vcmask 261120
        %v197 = vsel %vm196, %v195, 0.0
        %198 = vadd.xlane.f32.xlu0 %v197
        %v199 = vpop.xlane.xlu0 %198
        %s200 = sld [smem:[#allocation2]]
        %v201 = vstv %s200
        %v202 = vadd.f32 %v199, %v201
        %v203 = vtanh.pop %v202
        %vm204 = vcmask 7168
        %205 = vst.msk [vmem:[%s186] sm:$0xff] %vm204, %v203
        %p206 = scmp.lt.s32.totalorder %s18, 1
        %s207 = scalar_select %p206, %s18, 1
        %s208 = smul.addr %s207, 8
        %s209 = scalar_lea.vmem %s3, %s208
        // Predicated region
        $region37: #{tpu_custom_call.1} parent=31 // pred_check
          %p210 = pneg %p104
        $region38: #{tpu_custom_call.1} parent=31 // pred_check_branch
          %212 = sbr.rel (%p210) target = $region40
        $region39: #{tpu_custom_call.1} parent=31 // pred_region
          _
        $region40: #{tpu_custom_call.1} parent=31 // pred_fallthru
          _
      $region32: #{tpu_custom_call.1} parent=5 // pred_fallthru
        _
      %p213 = scmp.le.s32.totalorder 2, %s13
      // Predicated region
      $region41: #{tpu_custom_call.1} parent=5 // pred_check
        %p214 = pneg %p213
      $region42: #{tpu_custom_call.1} parent=5 // pred_check_branch
        %216 = sbr.rel (%p214) target = $region44
      $region43: #{tpu_custom_call.1} parent=5 // pred_region
        %s217 = ssub.s32 %s13, 2
        // Predicated region
        $region45: #{tpu_custom_call.1} parent=43 // pred_check
          %p218 = pneg %p110
        $region46: #{tpu_custom_call.1} parent=43 // pred_check_branch
          %220 = sbr.rel (%p218) target = $region48
        $region47: #{tpu_custom_call.1} parent=43 // pred_region
          %p221 = scmp.lt.s32.totalorder %s19, 1
          %s222 = scalar_select %p221, %s19, 1
          %s223 = smul.addr %s222, 8
          %s224 = scalar_lea.vmem %s3, %s223
        $region48: #{tpu_custom_call.1} parent=43 // pred_fallthru
          _
      $region44: #{tpu_custom_call.1} parent=5 // pred_fallthru
        _
    $region6: #{tpu_custom_call.1} parent=1 // loop_footer
      %s17 = sadd.s32 1, %s13
    $region7: #{tpu_custom_call.1} parent=1 // loop_footer_branch
      %12 = sbr.rel target = $region3
    $region8: #{tpu_custom_call.1} parent=1 // loop_exit
      _
    %225 = vsyncpa [#allocation4], 1
    %s226 = scalar_lea.sflag [#allocation4], 1
    %227 = vsyncpa %s226, 1

</llo_original>
